<compile_context>
chip_gen: v6e
topology: v6e:2x2x1
jax: 0.10.0
libtpu: 0.0.40
codegen_flags: <defaults>
</compile_context>

<pallas_src>
import numpy as np

import jax
import jax.numpy as jnp
from jax.experimental import pallas as pl
from jax.experimental.pallas import tpu as pltpu

LANE = 128

# ----------------------------------------------------------------------------
# Host-side (init-time) color science — scalar math, folded into one 3x3.
# ----------------------------------------------------------------------------

_M_SRGB_TO_XYZ = np.array([[0.4124564, 0.3575761, 0.1804375],
                           [0.2126729, 0.7151522, 0.0721750],
                           [0.0193339, 0.1191920, 0.9503041]], dtype=np.float64)

_M_XYZ_TO_SRGB = np.array([[ 3.2404542, -1.5371385, -0.4985314],
                           [-0.9692660,  1.8760108,  0.0415560],
                           [ 0.0556434, -0.2040259,  1.0572252]], dtype=np.float64)

_M_BRADFORD = np.array([[ 0.8951,  0.2664, -0.1614],
                        [-0.7502,  1.7135,  0.0367],
                        [ 0.0389, -0.0685,  1.0296]], dtype=np.float64)


def _cct_to_xy_kang2002(cct):
    """Kang 2002 CCT -> CIE xy chromaticity of the black-body white."""
    t = float(cct)
    if t <= 4000.0:
        x = (-0.2661239e9 / t**3 - 0.2343589e6 / t**2
             + 0.8776956e3 / t + 0.179910)
    else:
        x = (-3.0258469e9 / t**3 + 2.1070379e6 / t**2
             + 0.2226347e3 / t + 0.24039)
    if t <= 2222.0:
        y = -1.1063814 * x**3 - 1.34811020 * x**2 + 2.18555832 * x - 0.20219683
    elif t <= 4000.0:
        y = -0.9549476 * x**3 - 1.37418593 * x**2 + 2.09137015 * x - 0.16748867
    else:
        y = 3.0817580 * x**3 - 5.8733867 * x**2 + 3.75112997 * x - 0.37001483
    return x, y


def _whitepoint_xyz(cct):
    x, y = _cct_to_xy_kang2002(cct)
    return np.array([x / y, 1.0, (1.0 - x - y) / y], dtype=np.float64)


def _bradford_matrix(xyz_src, xyz_dst):
    s = _M_BRADFORD @ xyz_src
    d = _M_BRADFORD @ xyz_dst
    return np.linalg.inv(_M_BRADFORD) @ np.diag(d / s) @ _M_BRADFORD


def temperature_shift_matrix(test_temp, reference_temp):
    """Combined linear-sRGB -> linear-sRGB 3x3 for the temperature shift."""
    m_adapt = _bradford_matrix(_whitepoint_xyz(test_temp),
                               _whitepoint_xyz(reference_temp))
    return (_M_XYZ_TO_SRGB @ m_adapt @ _M_SRGB_TO_XYZ).astype(np.float32)


# ----------------------------------------------------------------------------
# Pallas kernel: fused inverse-gamma -> 3x3 -> gamma, fully elementwise.
# ----------------------------------------------------------------------------

def _temp_shift_kernel(mat_ref, x_ref, o_ref):
    # mat_ref : SMEM (9,) f32   — row-major combined 3x3 matrix.
    # x_ref   : VMEM (1, 3, tm, 128) sRGB block (R/G/B planes).
    # o_ref   : VMEM (1, 3, tm, 128) output sRGB block.
    r = x_ref[0, 0]
    g = x_ref[0, 1]
    b = x_ref[0, 2]

    inv_12_92 = 1.0 / 12.92   # constant divides -> multiplies
    inv_1_055 = 1.0 / 1.055

    def srgb_to_linear(c):
        c_pos = jnp.maximum(c, 0.0)
        hi = ((c_pos + 0.055) * inv_1_055) ** 2.4
        return jnp.where(c <= 0.04045, c * inv_12_92, hi)

    rl = srgb_to_linear(r)
    gl = srgb_to_linear(g)
    bl = srgb_to_linear(b)

    # Fused (XYZ->sRGB) @ Bradford @ (sRGB->XYZ) applied per pixel on the VPU.
    rl2 = mat_ref[0] * rl + mat_ref[1] * gl + mat_ref[2] * bl
    gl2 = mat_ref[3] * rl + mat_ref[4] * gl + mat_ref[5] * bl
    bl2 = mat_ref[6] * rl + mat_ref[7] * gl + mat_ref[8] * bl

    def linear_to_srgb(c):
        c_pos = jnp.maximum(c, 0.0)
        hi = 1.055 * c_pos ** (1.0 / 2.4) - 0.055
        return jnp.where(c <= 0.0031308, 12.92 * c, hi)

    o_ref[0, 0] = linear_to_srgb(rl2)
    o_ref[0, 1] = linear_to_srgb(gl2)
    o_ref[0, 2] = linear_to_srgb(bl2)


# ----------------------------------------------------------------------------
# Wrapper
# ----------------------------------------------------------------------------

def _round_up(x, m):
    return (x + m - 1) // m * m


def _choose_tile_m(M, N, tile_m):
    tile_m = max(8, (int(tile_m) // 8) * 8)
    if M > tile_m:
        return tile_m
    # Small spatial extent: if the batch axis gives no parallelism, split the
    # pixel axis cleanly so v7x's two TensorCores both get a grid tile.
    if N == 1 and M >= 16 and M % 16 == 0:
        return M // 2
    return M  # full-extent block (allowed even if not a multiple of 8)


def temperature_shift_srgb(im, test_temp, reference_temp, *, tile_m=512):
    """im: (N, 3, H, W) float32 sRGB image (NCHW).  Returns same shape/dtype."""
    N, C, H, W = im.shape
    assert C == 3, "expected 3 sRGB channels"
    im = im.astype(jnp.float32)

    mat = jnp.asarray(
        temperature_shift_matrix(test_temp, reference_temp).reshape(-1))

    HW = H * W
    M = pl.cdiv(HW, LANE)
    tm = _choose_tile_m(M, N, tile_m)
    m_pad = _round_up(M, tm)
    hw_pad = m_pad * LANE

    x = im.reshape(N, 3, HW)              # free reshape, natural NCHW order
    if hw_pad != HW:                      # pad only when 128 / tile alignment needs it
        x = jnp.pad(x, ((0, 0), (0, 0), (0, hw_pad - HW)))
    x = x.reshape(N, 3, m_pad, LANE)      # free split of the last axis

    out = pl.pallas_call(
        _temp_shift_kernel,
        out_shape=jax.ShapeDtypeStruct((N, 3, m_pad, LANE), jnp.float32),
        grid_spec=pltpu.PrefetchScalarGridSpec(
            num_scalar_prefetch=0,
            grid=(N, m_pad // tm),
            in_specs=[
                pl.BlockSpec(memory_space=pltpu.MemorySpace.SMEM),   # 3x3 matrix
                pl.BlockSpec((1, 3, tm, LANE), lambda n, i: (n, 0, i, 0)),
            ],
            out_specs=pl.BlockSpec((1, 3, tm, LANE), lambda n, i: (n, 0, i, 0)),
        ),
        compiler_params=pltpu.CompilerParams(
            dimension_semantics=("parallel", "parallel"),
            vmem_limit_bytes=32 * 1024 * 1024,
        ),
    )(mat, x)

    out = out.reshape(N, 3, hw_pad)
    if hw_pad != HW:
        out = out[:, :, :HW]
    return out.reshape(N, 3, H, W)


# ----------------------------------------------------------------------------
# Pure-NumPy reference (for a correctness spot-check)
# ----------------------------------------------------------------------------

def _reference_numpy(im, test_temp, reference_temp):
    m = temperature_shift_matrix(test_temp, reference_temp).astype(np.float64)
    x = np.asarray(im, dtype=np.float64)

    def to_lin(c):
        return np.where(c <= 0.04045, c / 12.92,
                        ((np.maximum(c, 0.0) + 0.055) / 1.055) ** 2.4)

    def to_srgb(c):
        return np.where(c <= 0.0031308, 12.92 * c,
                        1.055 * np.maximum(c, 0.0) ** (1.0 / 2.4) - 0.055)

    lin = to_lin(x)                                   # (N, 3, H, W)
    lin2 = np.einsum('ij,njhw->nihw', m, lin)
    return to_srgb(lin2)


if __name__ == "__main__":
    key = jax.random.PRNGKey(0)
    # NCHW sRGB image in [0, 1)
    im = jax.random.uniform(key, (2, 3, 16, 16), dtype=jnp.float32)

    test_temp = 6500.0        # original illuminant (K)
    reference_temp = 3500.0   # target illuminant (K)

    out = temperature_shift_srgb(im, test_temp, reference_temp)
    out = jax.block_until_ready(out)

    assert out.shape == im.shape and out.dtype == jnp.float32
    assert bool(jnp.all(jnp.isfinite(out)))

    ref = _reference_numpy(np.asarray(im), test_temp, reference_temp)
    assert np.allclose(np.asarray(out), ref, atol=5e-4, rtol=5e-3), \
        "mismatch vs. NumPy reference"

    print("KERNEL_OK")
</pallas_src>

<mosaic_0001>
module attributes {stable_mosaic.version = 11 : i64} {
  func.func @_temp_shift_kernel(%arg0: i32, %arg1: i32, %arg2: memref<9xf32, #tpu.memory_space<smem>>, %arg3: memref<1x3x2x128xf32, #tpu.memory_space<vmem>>, %arg4: memref<1x3x2x128xf32, #tpu.memory_space<vmem>>) attributes {dimension_semantics = [#tpu.dimension_semantics<parallel>, #tpu.dimension_semantics<parallel>], iteration_bounds = array<i64: 2, 1>, scalar_prefetch = 0 : i64, scratch_operands = 0 : i64, tpu.core_type = #tpu.core_type<tc>, window_params = [{transform_indices = @transform_0, window_bounds = array<i64: 9>}, {transform_indices = @transform_1, window_bounds = array<i64: 1, 3, 2, 128>}, {transform_indices = @transform_2, window_bounds = array<i64: 1, 3, 2, 128>}]} {
    %c0 = arith.constant 0 : index
    %c0_0 = arith.constant 0 : index
    %c0_1 = arith.constant 0 : index
    %c0_2 = arith.constant 0 : index
    %0 = vector.load %arg3[%c0, %c0_0, %c0_1, %c0_2] : memref<1x3x2x128xf32, #tpu.memory_space<vmem>>, vector<1x1x2x128xf32>
    %1 = vector.shape_cast %0 : vector<1x1x2x128xf32> to vector<2x128xf32>
    %c0_3 = arith.constant 0 : index
    %c1 = arith.constant 1 : index
    %c0_4 = arith.constant 0 : index
    %c0_5 = arith.constant 0 : index
    %2 = vector.load %arg3[%c0_3, %c1, %c0_4, %c0_5] : memref<1x3x2x128xf32, #tpu.memory_space<vmem>>, vector<1x1x2x128xf32>
    %3 = vector.shape_cast %2 : vector<1x1x2x128xf32> to vector<2x128xf32>
    %c0_6 = arith.constant 0 : index
    %c2 = arith.constant 2 : index
    %c0_7 = arith.constant 0 : index
    %c0_8 = arith.constant 0 : index
    %4 = vector.load %arg3[%c0_6, %c2, %c0_7, %c0_8] : memref<1x3x2x128xf32, #tpu.memory_space<vmem>>, vector<1x1x2x128xf32>
    %5 = vector.shape_cast %4 : vector<1x1x2x128xf32> to vector<2x128xf32>
    %cst = arith.constant 0.000000e+00 : f32
    %6 = vector.broadcast %cst : f32 to vector<2x128xf32>
    %7 = arith.maximumf %1, %6 : vector<2x128xf32>
    %cst_9 = arith.constant 5.500000e-02 : f32
    %8 = vector.broadcast %cst_9 : f32 to vector<2x128xf32>
    %9 = arith.addf %7, %8 : vector<2x128xf32>
    %cst_10 = arith.constant 0.947867274 : f32
    %10 = vector.broadcast %cst_10 : f32 to vector<2x128xf32>
    %11 = arith.mulf %9, %10 : vector<2x128xf32>
    %cst_11 = arith.constant 2.400000e+00 : f32
    %12 = vector.broadcast %cst_11 : f32 to vector<2x128xf32>
    %13 = math.powf %11, %12 : vector<2x128xf32>
    %cst_12 = arith.constant 4.045000e-02 : f32
    %14 = vector.broadcast %cst_12 : f32 to vector<2x128xf32>
    %15 = arith.cmpf ole, %1, %14 : vector<2x128xf32>
    %cst_13 = arith.constant 0.0773993805 : f32
    %16 = vector.broadcast %cst_13 : f32 to vector<2x128xf32>
    %17 = arith.mulf %1, %16 : vector<2x128xf32>
    %18 = arith.select %15, %17, %13 : vector<2x128xi1>, vector<2x128xf32>
    %cst_14 = arith.constant 0.000000e+00 : f32
    %19 = vector.broadcast %cst_14 : f32 to vector<2x128xf32>
    %20 = arith.maximumf %3, %19 : vector<2x128xf32>
    %cst_15 = arith.constant 5.500000e-02 : f32
    %21 = vector.broadcast %cst_15 : f32 to vector<2x128xf32>
    %22 = arith.addf %20, %21 : vector<2x128xf32>
    %cst_16 = arith.constant 0.947867274 : f32
    %23 = vector.broadcast %cst_16 : f32 to vector<2x128xf32>
    %24 = arith.mulf %22, %23 : vector<2x128xf32>
    %cst_17 = arith.constant 2.400000e+00 : f32
    %25 = vector.broadcast %cst_17 : f32 to vector<2x128xf32>
    %26 = math.powf %24, %25 : vector<2x128xf32>
    %cst_18 = arith.constant 4.045000e-02 : f32
    %27 = vector.broadcast %cst_18 : f32 to vector<2x128xf32>
    %28 = arith.cmpf ole, %3, %27 : vector<2x128xf32>
    %cst_19 = arith.constant 0.0773993805 : f32
    %29 = vector.broadcast %cst_19 : f32 to vector<2x128xf32>
    %30 = arith.mulf %3, %29 : vector<2x128xf32>
    %31 = arith.select %28, %30, %26 : vector<2x128xi1>, vector<2x128xf32>
    %cst_20 = arith.constant 0.000000e+00 : f32
    %32 = vector.broadcast %cst_20 : f32 to vector<2x128xf32>
    %33 = arith.maximumf %5, %32 : vector<2x128xf32>
    %cst_21 = arith.constant 5.500000e-02 : f32
    %34 = vector.broadcast %cst_21 : f32 to vector<2x128xf32>
    %35 = arith.addf %33, %34 : vector<2x128xf32>
    %cst_22 = arith.constant 0.947867274 : f32
    %36 = vector.broadcast %cst_22 : f32 to vector<2x128xf32>
    %37 = arith.mulf %35, %36 : vector<2x128xf32>
    %cst_23 = arith.constant 2.400000e+00 : f32
    %38 = vector.broadcast %cst_23 : f32 to vector<2x128xf32>
    %39 = math.powf %37, %38 : vector<2x128xf32>
    %cst_24 = arith.constant 4.045000e-02 : f32
    %40 = vector.broadcast %cst_24 : f32 to vector<2x128xf32>
    %41 = arith.cmpf ole, %5, %40 : vector<2x128xf32>
    %cst_25 = arith.constant 0.0773993805 : f32
    %42 = vector.broadcast %cst_25 : f32 to vector<2x128xf32>
    %43 = arith.mulf %5, %42 : vector<2x128xf32>
    %44 = arith.select %41, %43, %39 : vector<2x128xi1>, vector<2x128xf32>
    %c0_26 = arith.constant 0 : index
    %45 = memref.load %arg2[%c0_26] : memref<9xf32, #tpu.memory_space<smem>>
    %46 = vector.broadcast %45 : f32 to vector<2x128xf32>
    %47 = arith.mulf %46, %18 : vector<2x128xf32>
    %c1_27 = arith.constant 1 : index
    %48 = memref.load %arg2[%c1_27] : memref<9xf32, #tpu.memory_space<smem>>
    %49 = vector.broadcast %48 : f32 to vector<2x128xf32>
    %50 = arith.mulf %49, %31 : vector<2x128xf32>
    %51 = arith.addf %47, %50 : vector<2x128xf32>
    %c2_28 = arith.constant 2 : index
    %52 = memref.load %arg2[%c2_28] : memref<9xf32, #tpu.memory_space<smem>>
    %53 = vector.broadcast %52 : f32 to vector<2x128xf32>
    %54 = arith.mulf %53, %44 : vector<2x128xf32>
    %55 = arith.addf %51, %54 : vector<2x128xf32>
    %c3 = arith.constant 3 : index
    %56 = memref.load %arg2[%c3] : memref<9xf32, #tpu.memory_space<smem>>
    %57 = vector.broadcast %56 : f32 to vector<2x128xf32>
    %58 = arith.mulf %57, %18 : vector<2x128xf32>
    %c4 = arith.constant 4 : index
    %59 = memref.load %arg2[%c4] : memref<9xf32, #tpu.memory_space<smem>>
    %60 = vector.broadcast %59 : f32 to vector<2x128xf32>
    %61 = arith.mulf %60, %31 : vector<2x128xf32>
    %62 = arith.addf %58, %61 : vector<2x128xf32>
    %c5 = arith.constant 5 : index
    %63 = memref.load %arg2[%c5] : memref<9xf32, #tpu.memory_space<smem>>
    %64 = vector.broadcast %63 : f32 to vector<2x128xf32>
    %65 = arith.mulf %64, %44 : vector<2x128xf32>
    %66 = arith.addf %62, %65 : vector<2x128xf32>
    %c6 = arith.constant 6 : index
    %67 = memref.load %arg2[%c6] : memref<9xf32, #tpu.memory_space<smem>>
    %68 = vector.broadcast %67 : f32 to vector<2x128xf32>
    %69 = arith.mulf %68, %18 : vector<2x128xf32>
    %c7 = arith.constant 7 : index
    %70 = memref.load %arg2[%c7] : memref<9xf32, #tpu.memory_space<smem>>
    %71 = vector.broadcast %70 : f32 to vector<2x128xf32>
    %72 = arith.mulf %71, %31 : vector<2x128xf32>
    %73 = arith.addf %69, %72 : vector<2x128xf32>
    %c8 = arith.constant 8 : index
    %74 = memref.load %arg2[%c8] : memref<9xf32, #tpu.memory_space<smem>>
    %75 = vector.broadcast %74 : f32 to vector<2x128xf32>
    %76 = arith.mulf %75, %44 : vector<2x128xf32>
    %77 = arith.addf %73, %76 : vector<2x128xf32>
    %cst_29 = arith.constant 0.000000e+00 : f32
    %78 = vector.broadcast %cst_29 : f32 to vector<2x128xf32>
    %79 = arith.maximumf %55, %78 : vector<2x128xf32>
    %cst_30 = arith.constant 0.416666657 : f32
    %80 = vector.broadcast %cst_30 : f32 to vector<2x128xf32>
    %81 = math.powf %79, %80 : vector<2x128xf32>
    %cst_31 = arith.constant 1.055000e+00 : f32
    %82 = vector.broadcast %cst_31 : f32 to vector<2x128xf32>
    %83 = arith.mulf %82, %81 : vector<2x128xf32>
    %cst_32 = arith.constant 5.500000e-02 : f32
    %84 = vector.broadcast %cst_32 : f32 to vector<2x128xf32>
    %85 = arith.subf %83, %84 : vector<2x128xf32>
    %cst_33 = arith.constant 3.130800e-03 : f32
    %86 = vector.broadcast %cst_33 : f32 to vector<2x128xf32>
    %87 = arith.cmpf ole, %55, %86 : vector<2x128xf32>
    %cst_34 = arith.constant 1.292000e+01 : f32
    %88 = vector.broadcast %cst_34 : f32 to vector<2x128xf32>
    %89 = arith.mulf %88, %55 : vector<2x128xf32>
    %90 = arith.select %87, %89, %85 : vector<2x128xi1>, vector<2x128xf32>
    %c0_35 = arith.constant 0 : index
    %c0_36 = arith.constant 0 : index
    %c0_37 = arith.constant 0 : index
    %c0_38 = arith.constant 0 : index
    %91 = vector.load %arg4[%c0_35, %c0_36, %c0_37, %c0_38] : memref<1x3x2x128xf32, #tpu.memory_space<vmem>>, vector<1x1x2x128xf32>
    %92 = vector.shape_cast %91 : vector<1x1x2x128xf32> to vector<2x128xf32>
    %93 = vector.shape_cast %90 : vector<2x128xf32> to vector<1x1x2x128xf32>
    tpu.vector_store %arg4[%c0_35, %c0_36, %c0_37, %c0_38], %93 {strides = array<i32>} : memref<1x3x2x128xf32, #tpu.memory_space<vmem>>, vector<1x1x2x128xf32>,
    %cst_39 = arith.constant 0.000000e+00 : f32
    %94 = vector.broadcast %cst_39 : f32 to vector<2x128xf32>
    %95 = arith.maximumf %66, %94 : vector<2x128xf32>
    %cst_40 = arith.constant 0.416666657 : f32
    %96 = vector.broadcast %cst_40 : f32 to vector<2x128xf32>
    %97 = math.powf %95, %96 : vector<2x128xf32>
    %cst_41 = arith.constant 1.055000e+00 : f32
    %98 = vector.broadcast %cst_41 : f32 to vector<2x128xf32>
    %99 = arith.mulf %98, %97 : vector<2x128xf32>
    %cst_42 = arith.constant 5.500000e-02 : f32
    %100 = vector.broadcast %cst_42 : f32 to vector<2x128xf32>
    %101 = arith.subf %99, %100 : vector<2x128xf32>
    %cst_43 = arith.constant 3.130800e-03 : f32
    %102 = vector.broadcast %cst_43 : f32 to vector<2x128xf32>
    %103 = arith.cmpf ole, %66, %102 : vector<2x128xf32>
    %cst_44 = arith.constant 1.292000e+01 : f32
    %104 = vector.broadcast %cst_44 : f32 to vector<2x128xf32>
    %105 = arith.mulf %104, %66 : vector<2x128xf32>
    %106 = arith.select %103, %105, %101 : vector<2x128xi1>, vector<2x128xf32>
    %c0_45 = arith.constant 0 : index
    %c1_46 = arith.constant 1 : index
    %c0_47 = arith.constant 0 : index
    %c0_48 = arith.constant 0 : index
    %107 = vector.load %arg4[%c0_45, %c1_46, %c0_47, %c0_48] : memref<1x3x2x128xf32, #tpu.memory_space<vmem>>, vector<1x1x2x128xf32>
    %108 = vector.shape_cast %107 : vector<1x1x2x128xf32> to vector<2x128xf32>
    %109 = vector.shape_cast %106 : vector<2x128xf32> to vector<1x1x2x128xf32>
    tpu.vector_store %arg4[%c0_45, %c1_46, %c0_47, %c0_48], %109 {strides = array<i32>} : memref<1x3x2x128xf32, #tpu.memory_space<vmem>>, vector<1x1x2x128xf32>,
    %cst_49 = arith.constant 0.000000e+00 : f32
    %110 = vector.broadcast %cst_49 : f32 to vector<2x128xf32>
    %111 = arith.maximumf %77, %110 : vector<2x128xf32>
    %cst_50 = arith.constant 0.416666657 : f32
    %112 = vector.broadcast %cst_50 : f32 to vector<2x128xf32>
    %113 = math.powf %111, %112 : vector<2x128xf32>
    %cst_51 = arith.constant 1.055000e+00 : f32
    %114 = vector.broadcast %cst_51 : f32 to vector<2x128xf32>
    %115 = arith.mulf %114, %113 : vector<2x128xf32>
    %cst_52 = arith.constant 5.500000e-02 : f32
    %116 = vector.broadcast %cst_52 : f32 to vector<2x128xf32>
    %117 = arith.subf %115, %116 : vector<2x128xf32>
    %cst_53 = arith.constant 3.130800e-03 : f32
    %118 = vector.broadcast %cst_53 : f32 to vector<2x128xf32>
    %119 = arith.cmpf ole, %77, %118 : vector<2x128xf32>
    %cst_54 = arith.constant 1.292000e+01 : f32
    %120 = vector.broadcast %cst_54 : f32 to vector<2x128xf32>
    %121 = arith.mulf %120, %77 : vector<2x128xf32>
    %122 = arith.select %119, %121, %117 : vector<2x128xi1>, vector<2x128xf32>
    %c0_55 = arith.constant 0 : index
    %c2_56 = arith.constant 2 : index
    %c0_57 = arith.constant 0 : index
    %c0_58 = arith.constant 0 : index
    %123 = vector.load %arg4[%c0_55, %c2_56, %c0_57, %c0_58] : memref<1x3x2x128xf32, #tpu.memory_space<vmem>>, vector<1x1x2x128xf32>
    %124 = vector.shape_cast %123 : vector<1x1x2x128xf32> to vector<2x128xf32>
    %125 = vector.shape_cast %122 : vector<2x128xf32> to vector<1x1x2x128xf32>
    tpu.vector_store %arg4[%c0_55, %c2_56, %c0_57, %c0_58], %125 {strides = array<i32>} : memref<1x3x2x128xf32, #tpu.memory_space<vmem>>, vector<1x1x2x128xf32>,
    return
  }
  func.func @transform_0(%arg0: i32, %arg1: i32) -> i32 {
    %c0_i32 = arith.constant 0 : i32
    %c0_i32_0 = arith.constant 0 : i32
    return %c0_i32 : i32
  }
  func.func @transform_1(%arg0: i32, %arg1: i32) -> (i32, i32, i32, i32) {
    %c0_i32 = arith.constant 0 : i32
    %c0_i32_0 = arith.constant 0 : i32
    %c0_i32_1 = arith.constant 0 : i32
    return %arg0, %c0_i32, %arg1, %c0_i32_0 : i32, i32, i32, i32
  }
  func.func @transform_2(%arg0: i32, %arg1: i32) -> (i32, i32, i32, i32) {
    %c0_i32 = arith.constant 0 : i32
    %c0_i32_0 = arith.constant 0 : i32
    %c0_i32_1 = arith.constant 0 : i32
    return %arg0, %c0_i32, %arg1, %c0_i32_0 : i32, i32, i32, i32
  }
}

</mosaic_0001>

<llo_original>
// kernel: tpu_custom_call.1
$region0: #{tpu_custom_call.1}
  #allocation0 [shape = 'u32[]', space=smem, size = 0x4, offset = 0x4, fixed_abs, tag = 'smem constant byte address 0x4 - core index']
  #allocation1 [shape = 'u32[144,128]{1,0:T(1,128)}', space=vmem, size = 0x12000, scoped, tag = 'internal scratch']
  %s0 = inlined_call_operand.hbm [shape: f32[9], index: 0, kind: input, shape index: {}]
  %s1 = inlined_call_operand.hbm [shape: f32[2,3,2,128], index: 1, kind: input, shape index: {}]
  %s2 = inlined_call_operand.hbm [shape: f32[2,3,2,128], index: 2, kind: output, shape index: {}]
  %s3 = sld [smem:[#allocation0]]
  $region49: #{tpu_custom_call.1} parent=0
    _
  %s5 = ssub.s32 1, %s3
  %s6 = scalar_select 0, %s5, %s3
  $region1: #{tpu_custom_call.1} parent=0
    #allocation2 [shape = 'u8[512]{0}', space=smem, size = 0x200, scoped, tag = 'input window, operand 0, single buffered']
    #allocation3 [shape = 's32[2]{0}', space=sflag, size = 0x8, scoped, tag = 'scoped memory for tpu_custom_call.1']
    #allocation4 [shape = 's32[2]{0}', space=sflag, size = 0x8, scoped, tag = 'scoped memory for tpu_custom_call.1']
    #allocation5 [shape = 's32[2]{0}', space=sflag, size = 0x8, scoped, tag = 'scoped memory for tpu_custom_call.1']
    #allocation6 [shape = 'u8[6144]{0}', space=vmem, size = 0x1800, scoped, tag = 'input window, operand 1']
    #allocation7 [shape = 'u8[6144]{0}', space=vmem, size = 0x1800, scoped, tag = 'output window, operand 0']
    %7 = vsyncpa [#allocation5], 0
    %8 = vsyncpa [#allocation3], 0
    %s9 = scalar_lea.sflag [#allocation3], 1
    %10 = vsyncpa %s9, 0
    %11 = vsyncpa [#allocation4], 0
    %s12 = scalar_lea.sflag [#allocation4], 1
    %13 = vsyncpa %s12, 0
    loop: start=0, step=1, limit=4
    $region2: #{tpu_custom_call.1} parent=1 // loop_pre_header
      _
    $region3: #{tpu_custom_call.1} parent=1 // loop_header
      %s15 = sphi 0, %s19
      %p16 = scmp.ge.s32.totalorder %s15, 4
      %s22 = sphi 0, %s34
      %s23 = sphi 0, %s30
      %s24 = sphi 0, %s22
      %s25 = sphi 0, %s23
      %s26 = sphi 0, %s24
      %s27 = sphi 0, %s25
      %s35 = sphi 0, %s35
      %s37 = sphi 0, %s35
      %s38 = sphi 0, %s37
      %s52 = sphi 0, %s38
      %s60 = sphi 0, %s62
      %s63 = sphi 0, %s60
      %s64 = sphi 0, %s63
      %s80 = sphi 0, %s64
      %s88 = sphi 0, %s90
      %s91 = sphi 0, %s88
      %s92 = sphi 0, %s91
      %s108 = sphi 0, %s92
    $region4: #{tpu_custom_call.1} parent=1 // loop_header_branch
      %18 = sbr.rel (%p16) target = $region8
    $region5: #{tpu_custom_call.1} parent=1 // loop_body
      %s20 = ssub.s32 %s15, 1
      %s21 = ssub.s32 %s15, 2
      %s28 = sadd.s32 1, %s23
      %p29 = scmp.ge.s32.totalorder %s28, 1
      %s30 = scalar_select %p29, 0, %s28
      %s31 = sadd.s32 1, %s22
      %s32 = scalar_select %p29, %s31, %s22
      %p33 = scmp.ge.s32.totalorder %s32, 2
      %s34 = scalar_select %p33, 0, %s32
      %s36 = sadd.s32 %s35, 1
      %p39 = scmp.eq.s32.totalorder %s15, 1
      %p40 = scmp.ne.s32.totalorder %s35, %s37
      %p41 = scmp.eq.s32.totalorder %s15, 0
      %p42 = por %p40, %p41
      %p43 = scmp.ne.s32.totalorder %s35, %s37
      %p44 = scmp.eq.s32.totalorder %s20, 1
      %p45 = por %p43, %p44
      %p46 = scmp.ne.s32.totalorder %s37, %s38
      %p47 = scmp.eq.s32.totalorder %s20, 0
      %p48 = por %p46, %p47
      %p49 = scmp.ne.s32.totalorder %s37, %s38
      %p50 = scmp.eq.s32.totalorder %s21, 1
      %p51 = por %p49, %p50
      %p53 = scmp.ne.s32.totalorder %s38, %s52
      %p54 = scmp.eq.s32.totalorder %s21, 0
      %p55 = por %p53, %p54
      %s56 = ssub.s32 %s22, %s34
      %s57 = ssub.s32 %s23, %s30
      %s58 = sor.u32 %s56, %s57
      %p59 = scmp.eq.s32.totalorder %s58, 0
      %s61 = sadd.s32 %s60, 1
      %s62 = scalar_select %p59, %s60, %s61
      %p65 = pneg %p59
      %p66 = scmp.eq.s32.totalorder %s15, 1
      %p67 = por %p65, %p66
      %p68 = scmp.ne.s32.totalorder %s60, %s63
      %p69 = scmp.eq.s32.totalorder %s15, 0
      %p70 = por %p68, %p69
      %p71 = scmp.ne.s32.totalorder %s60, %s63
      %p72 = scmp.eq.s32.totalorder %s20, 1
      %p73 = por %p71, %p72
      %p74 = scmp.ne.s32.totalorder %s63, %s64
      %p75 = scmp.eq.s32.totalorder %s20, 0
      %p76 = por %p74, %p75
      %p77 = scmp.ne.s32.totalorder %s63, %s64
      %p78 = scmp.eq.s32.totalorder %s21, 1
      %p79 = por %p77, %p78
      %p81 = scmp.ne.s32.totalorder %s64, %s80
      %p82 = scmp.eq.s32.totalorder %s21, 0
      %p83 = por %p81, %p82
      %s84 = ssub.s32 %s22, %s34
      %s85 = ssub.s32 %s23, %s30
      %s86 = sor.u32 %s84, %s85
      %p87 = scmp.eq.s32.totalorder %s86, 0
      %s89 = sadd.s32 %s88, 1
      %s90 = scalar_select %p87, %s88, %s89
      %p93 = pneg %p87
      %p94 = scmp.eq.s32.totalorder %s15, 1
      %p95 = por %p93, %p94
      %p96 = scmp.ne.s32.totalorder %s88, %s91
      %p97 = scmp.eq.s32.totalorder %s15, 0
      %p98 = por %p96, %p97
      %p99 = scmp.ne.s32.totalorder %s88, %s91
      %p100 = scmp.eq.s32.totalorder %s20, 1
      %p101 = por %p99, %p100
      %p102 = scmp.ne.s32.totalorder %s91, %s92
      %p103 = scmp.eq.s32.totalorder %s20, 0
      %p104 = por %p102, %p103
      %p105 = scmp.ne.s32.totalorder %s91, %s92
      %p106 = scmp.eq.s32.totalorder %s21, 1
      %p107 = por %p105, %p106
      %p109 = scmp.ne.s32.totalorder %s92, %s108
      %p110 = scmp.eq.s32.totalorder %s21, 0
      %p111 = por %p109, %p110
      %p112 = scmp.le.s32.totalorder 1, %s15
      %p113 = scmp.lt.s32.totalorder %s15, 3
      %p114 = pnand %p112, %p113
      %p115 = pneg %p114
      // Predicated region
      $region9: #{tpu_custom_call.1} parent=5 // pred_check
        _
      $region10: #{tpu_custom_call.1} parent=5 // pred_check_branch
        %117 = sbr.rel (%p114) target = $region12
      $region11: #{tpu_custom_call.1} parent=5 // pred_region
        %s118 = ssub.s32 %s15, 1
        // Predicated region
        $region13: #{tpu_custom_call.1} parent=11 // pred_check
          %p119 = pneg %p48
        $region14: #{tpu_custom_call.1} parent=11 // pred_check_branch
          %121 = sbr.rel (%p119) target = $region16
        $region15: #{tpu_custom_call.1} parent=11 // pred_region
          %s123 = ssub.s32 16, 16
          %124 = vsyncadd [#allocation5], %s123
          %127 = dma.hbm_to_smem %s0, 16, [#allocation2], [#allocation5]
        $region16: #{tpu_custom_call.1} parent=11 // pred_fallthru
          _
      $region12: #{tpu_custom_call.1} parent=5 // pred_fallthru
        _
      %p128 = scmp.lt.s32.totalorder %s15, 2
      // Predicated region
      $region17: #{tpu_custom_call.1} parent=5 // pred_check
        %p129 = pneg %p128
      $region18: #{tpu_custom_call.1} parent=5 // pred_check_branch
        %131 = sbr.rel (%p129) target = $region20
      $region19: #{tpu_custom_call.1} parent=5 // pred_region
        // Predicated region
        $region21: #{tpu_custom_call.1} parent=19 // pred_check
          %p132 = pneg %p70
        $region22: #{tpu_custom_call.1} parent=19 // pred_check_branch
          %134 = sbr.rel (%p132) target = $region24
        $region23: #{tpu_custom_call.1} parent=19 // pred_region
          %s135 = sand.u32 %s60, 1
          %s136 = scalar_lea.sflag [#allocation3], %s135
          %s137 = sand.u32 %s60, 1
          %s138 = smul.addr %s137, 6
          %s139 = scalar_lea.vmem [#allocation6], %s138
          %s141 = ssub.s32 96, 96
          %142 = vsyncadd %s136, %s141
          %s143 = smul.addr %s22, 3
          %s144 = sadd.s32 %s23, %s143
          %s145 = smul.addr %s144, 32
          %s146 = scalar_lea.hbm %s1, %s145
          %s147 = sshll.u32 %s139, 4
          %s148 = int_to_ptr.vmem [resolvable:$true] %s147
          %153 = dma.hbm_to_vmem [thread:$0]  %s146, 96, %s148, %s136, 32, 32, 2
        $region24: #{tpu_custom_call.1} parent=19 // pred_fallthru
          _
      $region20: #{tpu_custom_call.1} parent=5 // pred_fallthru
        _
      %p154 = scmp.le.s32.totalorder 1, %s15
      %p155 = scmp.lt.s32.totalorder %s15, 3
      %p156 = pnand %p154, %p155
      %p157 = pneg %p156
      // Predicated region
      $region25: #{tpu_custom_call.1} parent=5 // pred_check
        _
      $region26: #{tpu_custom_call.1} parent=5 // pred_check_branch
        %159 = sbr.rel (%p156) target = $region28
      $region27: #{tpu_custom_call.1} parent=5 // pred_region
        %s160 = ssub.s32 %s15, 1
        // Predicated region
        $region29: #{tpu_custom_call.1} parent=27 // pred_check
          %p161 = pneg %p48
        $region30: #{tpu_custom_call.1} parent=27 // pred_check_branch
          %163 = sbr.rel (%p161) target = $region32
        $region31: #{tpu_custom_call.1} parent=27 // pred_region
          %164 = dma.done [#allocation5], 16
        $region32: #{tpu_custom_call.1} parent=27 // pred_fallthru
          _
        %s165 = sand.u32 %s63, 1
        %s166 = scalar_lea.sflag [#allocation3], %s165
        %s167 = sand.u32 %s63, 1
        %s168 = smul.addr %s167, 6
        %s169 = scalar_lea.vmem [#allocation6], %s168
        // Predicated region
        $region33: #{tpu_custom_call.1} parent=27 // pred_check
          %p170 = pneg %p76
        $region34: #{tpu_custom_call.1} parent=27 // pred_check_branch
          %172 = sbr.rel (%p170) target = $region36
        $region35: #{tpu_custom_call.1} parent=27 // pred_region
          %173 = dma.done %s166, 96
        $region36: #{tpu_custom_call.1} parent=27 // pred_fallthru
          _
        %174 = sfence
        %p175 = pneg %p48
        %p176 = pneg %p45
        %s177 = sand.u32 %s63, 1
        %s178 = scalar_lea.sflag [#allocation3], %s177
        %s179 = sand.u32 %s63, 1
        %s180 = smul.addr %s179, 6
        %s181 = scalar_lea.vmem [#allocation6], %s180
        %p182 = pneg %p76
        %p183 = pneg %p73
        %p184 = pneg %p104
        %p185 = pneg %p101
        %s186 = sand.u32 %s91, 1
        %s187 = scalar_lea.sflag [#allocation4], %s186
        %s188 = sand.u32 %s91, 1
        %s189 = smul.addr %s188, 6
        %s190 = scalar_lea.vmem [#allocation7], %s189
        %v191 = vld [vmem:[%s169] sm:$0x3]
        %s192 = scalar_lea.vmem %s169, 2 [#allocation6]
        %v193 = vld [vmem:[%s192] sm:$0x3]
        %s194 = scalar_lea.vmem %s169, 4 [#allocation6]
        %v195 = vld [vmem:[%s194] sm:$0x3]
        %v196 = vmax.f32 %v191, 0.0
        %v197 = vadd.f32 %v196, 0.055
        %v198 = vmul.f32 %v197, 0.9478673
        %v199 = vpow.f32 %v198, 2.4
        %vm200 = vcmp.le.f32.partialorder %v191, 0.04045
        %v201 = vmul.f32 %v191, 0.07739938
        %v202 = vsel %vm200, %v201, %v199
        %v203 = vmax.f32 %v193, 0.0
        %v204 = vadd.f32 %v203, 0.055
        %v205 = vmul.f32 %v204, 0.9478673
        %v206 = vpow.f32 %v205, 2.4
        %vm207 = vcmp.le.f32.partialorder %v193, 0.04045
        %v208 = vmul.f32 %v193, 0.07739938
        %v209 = vsel %vm207, %v208, %v206
        %v210 = vmax.f32 %v195, 0.0
        %v211 = vadd.f32 %v210, 0.055
        %v212 = vmul.f32 %v211, 0.9478673
        %v213 = vpow.f32 %v212, 2.4
        %vm214 = vcmp.le.f32.partialorder %v195, 0.04045
        %v215 = vmul.f32 %v195, 0.07739938
        %v216 = vsel %vm214, %v215, %v213
        %s217 = sld [smem:[#allocation2]]
        %v218 = vstv %s217
        %v219 = vmul.f32 %v218, %v202
        %s220 = sld [smem:[#allocation2 + $0x1]]
        %v221 = vstv %s220
        %v222 = vmul.f32 %v221, %v209
        %v223 = vadd.f32 %v219, %v222
        %s224 = sld [smem:[#allocation2 + $0x2]]
        %v225 = vstv %s224
        %v226 = vmul.f32 %v225, %v216
        %v227 = vadd.f32 %v223, %v226
        %s228 = sld [smem:[#allocation2 + $0x3]]
        %v229 = vstv %s228
        %v230 = vmul.f32 %v229, %v202
        %s231 = sld [smem:[#allocation2 + $0x4]]
        %v232 = vstv %s231
        %v233 = vmul.f32 %v232, %v209
        %v234 = vadd.f32 %v230, %v233
        %s235 = sld [smem:[#allocation2 + $0x5]]
        %v236 = vstv %s235
        %v237 = vmul.f32 %v236, %v216
        %v238 = vadd.f32 %v234, %v237
        %s239 = sld [smem:[#allocation2 + $0x6]]
        %v240 = vstv %s239
        %v241 = vmul.f32 %v240, %v202
        %s242 = sld [smem:[#allocation2 + $0x7]]
        %v243 = vstv %s242
        %v244 = vmul.f32 %v243, %v209
        %v245 = vadd.f32 %v241, %v244
        %s246 = sld [smem:[#allocation2 + $0x8]]
        %v247 = vstv %s246
        %v248 = vmul.f32 %v247, %v216
        %v249 = vadd.f32 %v245, %v248
        %v250 = vmax.f32 %v227, 0.0
        %v251 = vpow.f32 %v250, 0.41666666
        %v252 = vmul.f32 %v251, 1.055
        %v253 = vsub.f32 %v252, 0.055
        %vm254 = vcmp.le.f32.partialorder %v227, 0.0031308
        %v255 = vmul.f32 %v227, 12.92
        %v256 = vsel %vm254, %v255, %v253
        %257 = vst [vmem:[%s190] sm:$0x3] %v256
        %v258 = vmax.f32 %v238, 0.0
        %v259 = vpow.f32 %v258, 0.41666666
        %v260 = vmul.f32 %v259, 1.055
        %v261 = vsub.f32 %v260, 0.055
        %vm262 = vcmp.le.f32.partialorder %v238, 0.0031308
        %v263 = vmul.f32 %v238, 12.92
        %v264 = vsel %vm262, %v263, %v261
        %s265 = scalar_lea.vmem %s190, 2 [#allocation7]
        %266 = vst [vmem:[%s265] sm:$0x3] %v264
        %v267 = vmax.f32 %v249, 0.0
        %v268 = vpow.f32 %v267, 0.41666666
        %v269 = vmul.f32 %v268, 1.055
        %v270 = vsub.f32 %v269, 0.055
        %vm271 = vcmp.le.f32.partialorder %v249, 0.0031308
        %v272 = vmul.f32 %v249, 12.92
        %v273 = vsel %vm271, %v272, %v270
        %s274 = scalar_lea.vmem %s190, 4 [#allocation7]
        %275 = vst [vmem:[%s274] sm:$0x3] %v273
        %s276 = sand.u32 %s91, 1
        %s277 = scalar_lea.sflag [#allocation4], %s276
        %s278 = sand.u32 %s91, 1
        %s279 = smul.addr %s278, 6
        %s280 = scalar_lea.vmem [#allocation7], %s279
        // Predicated region
        $region37: #{tpu_custom_call.1} parent=27 // pred_check
          %p281 = pneg %p101
        $region38: #{tpu_custom_call.1} parent=27 // pred_check_branch
          %283 = sbr.rel (%p281) target = $region40
        $region39: #{tpu_custom_call.1} parent=27 // pred_region
          %s285 = ssub.s32 96, 96
          %286 = vsyncadd %s277, %s285
          %s287 = smul.addr %s24, 3
          %s288 = sadd.s32 %s25, %s287
          %s289 = smul.addr %s288, 32
          %s290 = scalar_lea.hbm %s2, %s289
          %s291 = sshll.u32 %s280, 4
          %s292 = int_to_ptr.vmem [resolvable:$true] %s291
          %297 = dma.vmem_to_hbm [thread:$0]  %s292, 96, %s290, %s277, 32, 32, 2
        $region40: #{tpu_custom_call.1} parent=27 // pred_fallthru
          _
      $region28: #{tpu_custom_call.1} parent=5 // pred_fallthru
        _
      %p298 = scmp.le.s32.totalorder 2, %s15
      // Predicated region
      $region41: #{tpu_custom_call.1} parent=5 // pred_check
        %p299 = pneg %p298
      $region42: #{tpu_custom_call.1} parent=5 // pred_check_branch
        %301 = sbr.rel (%p299) target = $region44
      $region43: #{tpu_custom_call.1} parent=5 // pred_region
        %s302 = ssub.s32 %s15, 2
        // Predicated region
        $region45: #{tpu_custom_call.1} parent=43 // pred_check
          %p303 = pneg %p107
        $region46: #{tpu_custom_call.1} parent=43 // pred_check_branch
          %305 = sbr.rel (%p303) target = $region48
        $region47: #{tpu_custom_call.1} parent=43 // pred_region
          %s306 = sand.u32 %s92, 1
          %s307 = scalar_lea.sflag [#allocation4], %s306
          %s308 = sand.u32 %s92, 1
          %s309 = smul.addr %s308, 6
          %s310 = scalar_lea.vmem [#allocation7], %s309
          %311 = dma.done %s307, 96
        $region48: #{tpu_custom_call.1} parent=43 // pred_fallthru
          _
      $region44: #{tpu_custom_call.1} parent=5 // pred_fallthru
        _
    $region6: #{tpu_custom_call.1} parent=1 // loop_footer
      %s19 = sadd.s32 1, %s15
    $region7: #{tpu_custom_call.1} parent=1 // loop_footer_branch
      %14 = sbr.rel target = $region3
    $region8: #{tpu_custom_call.1} parent=1 // loop_exit
      _
    %312 = vsyncpa [#allocation3], 1
    %s313 = scalar_lea.sflag [#allocation3], 1
    %314 = vsyncpa %s313, 1
    %315 = vsyncpa [#allocation4], 1
    %s316 = scalar_lea.sflag [#allocation4], 1
    %317 = vsyncpa %s316, 1
    %318 = vsyncpa [#allocation5], 1
    %s319 = scalar_lea.sflag [#allocation5], 1
    %320 = vsyncpa %s319, 1

</llo_original>
